<compile_context>
chip_gen: v6e
topology: v6e:2x2x1
jax: 0.10.0
libtpu: 0.0.40
codegen_flags: <defaults>
</compile_context>

<pallas_src>
import functools
import math

import jax
import jax.numpy as jnp
from jax import lax
from jax.experimental import pallas as pl
from jax.experimental.pallas import tpu as pltpu


def _round_up(x: int, m: int) -> int:
    return (x + m - 1) // m * m


def _elsa_kernel(x_ref, a_ref, o_ref, acc_ref, *, compute_dtype):
    """One (batch_tile, embed_tile) grid step.

    x_ref  : (TB, Np)   input batch tile (original dtype, e.g. f32)
    a_ref  : (Np, TE)   encoder slab in compute_dtype (e.g. bf16)
    o_ref  : (TB, Np)   output tile, written on the last embed step
    acc_ref: (TB, Np)   f32 VMEM accumulator for the decode result
    """
    k = pl.program_id(1)

    @pl.when(k == 0)
    def _init():
        acc_ref[...] = jnp.zeros_like(acc_ref)

    a = a_ref[...]                               # (Np, TE), compute_dtype
    x_mm = x_ref[...].astype(compute_dtype)      # MXU input dtype

    # encode partial: (TB, TE) on the MXU, f32 accumulation.
    e = jnp.dot(x_mm, a, preferred_element_type=jnp.float32)

    # decode partial: contract the TE axis of e with the TE axis of A
    # (i.e. e @ A.T) without materializing A.T in VMEM.
    d = lax.dot_general(
        e.astype(compute_dtype), a,
        dimension_numbers=(((1,), (1,)), ((), ())),
        preferred_element_type=jnp.float32,
    )
    acc_ref[...] += d

    @pl.when(k == pl.num_programs(1) - 1)
    def _finalize():
        # subtract / relu in f32; downcast only at the store.
        x_f32 = x_ref[...].astype(jnp.float32)
        o_ref[...] = jnp.maximum(acc_ref[...] - x_f32, 0.0).astype(o_ref.dtype)


def elsa_forward(
    x: jax.Array,
    encoder: jax.Array,
    *,
    tile_b: int = 256,
    tile_e: int = 512,
    compute_dtype=jnp.bfloat16,
) -> jax.Array:
    """relu((x @ A) @ A.T - x), tiled over batch and (reduction) embedding dim."""
    B, N = x.shape
    N2, E = encoder.shape
    assert N == N2, "encoder first dim must match x feature dim"

    # Pad everything to MXU/vreg-friendly sizes. Zero padding is inert here:
    # zero x-rows give zero output rows; zero encoder rows/cols contribute 0.
    Np = _round_up(N, 128)
    tb = min(tile_b, _round_up(max(B, 128), 8))     # keep >=128 MXU rows
    Bp = _round_up(B, tb)
    te = min(tile_e, _round_up(E, 128))             # multiple of 128
    Ep = _round_up(E, te)

    x_p = jnp.pad(x, ((0, Bp - B), (0, Np - N)))
    a_p = jnp.pad(encoder.astype(compute_dtype), ((0, Np - N), (0, Ep - E)))

    # Advisory cost estimate for XLA's scheduler.
    flops = 4 * Bp * Np * Ep                        # encode + decode matmuls
    bytes_accessed = (
        x_p.size * x_p.dtype.itemsize               # x read
        + Bp * Np * x.dtype.itemsize                # out write
        + a_p.size * a_p.dtype.itemsize             # encoder read
    )
    cost = pl.CostEstimate(
        flops=flops, transcendentals=0, bytes_accessed=bytes_accessed
    )

    # TODO(synk): for item counts where a (tile_b, N) f32 accumulator no longer
    # fits in VMEM, split decode over an N-output tile axis (two-kernel pass).
    out = pl.pallas_call(
        functools.partial(_elsa_kernel, compute_dtype=compute_dtype),
        out_shape=jax.ShapeDtypeStruct((Bp, Np), x.dtype),
        grid_spec=pltpu.PrefetchScalarGridSpec(
            num_scalar_prefetch=0,
            grid=(Bp // tb, Ep // te),
            in_specs=[
                pl.BlockSpec((tb, Np), lambda i, k: (i, 0)),   # x batch tile
                pl.BlockSpec((Np, te), lambda i, k: (0, k)),   # encoder slab
            ],
            out_specs=pl.BlockSpec((tb, Np), lambda i, k: (i, 0)),
            scratch_shapes=[pltpu.VMEM((tb, Np), jnp.float32)],
        ),
        compiler_params=pltpu.CompilerParams(
            dimension_semantics=("parallel", "arbitrary"),
            vmem_limit_bytes=64 * 1024 * 1024,
        ),
        cost_estimate=cost,
    )(x_p, a_p)

    return out[:B, :N]


def init_encoder(key: jax.Array, input_dim: int, embedding_dim: int) -> jax.Array:
    """Kaiming-uniform init + row-wise L2 normalization (ELSA.__init__)."""
    # torch kaiming_uniform_ default: gain = sqrt(2), fan_in = embedding_dim
    bound = math.sqrt(6.0 / embedding_dim)
    enc = jax.random.uniform(
        key, (input_dim, embedding_dim), dtype=jnp.float32,
        minval=-bound, maxval=bound,
    )
    norm = jnp.linalg.norm(enc, axis=-1, keepdims=True)
    return enc / norm


def elsa_forward_ref(x: jax.Array, encoder: jax.Array) -> jax.Array:
    """Pure-JAX f32 reference for correctness checks."""
    e = x @ encoder
    d = e @ encoder.T
    return jnp.maximum(d - x, 0.0)


if __name__ == "__main__":
    # Small shapes consistent with the module:
    #   batch=8 users, input_dim=256 items, embedding_dim=128
    B, INPUT_DIM, EMBED_DIM = 8, 256, 128

    key = jax.random.PRNGKey(0)
    k_enc, k_x = jax.random.split(key)

    encoder = init_encoder(k_enc, INPUT_DIM, EMBED_DIM)
    # Synthetic "interaction" batch (sparse binary-like data).
    x = (jax.random.uniform(k_x, (B, INPUT_DIM), dtype=jnp.float32) > 0.8).astype(
        jnp.float32
    )

    ref = elsa_forward_ref(x, encoder)

    # 1) Exact-semantics check: f32 matmul path must match the reference tightly.
    out_f32 = jax.block_until_ready(
        elsa_forward(x, encoder, compute_dtype=jnp.float32)
    )
    assert out_f32.shape == (B, INPUT_DIM)
    assert jnp.allclose(out_f32, ref, atol=1e-5, rtol=1e-5), "f32 path mismatch"

    # 2) Performance path: bf16 MXU inputs / f32 accumulation (default config).
    out_bf16 = jax.block_until_ready(elsa_forward(x, encoder))
    assert out_bf16.shape == (B, INPUT_DIM)
    assert jnp.allclose(out_bf16, ref, atol=5e-2, rtol=5e-2), "bf16 path mismatch"

    print("KERNEL_OK")
</pallas_src>

<mosaic_0001>
module attributes {stable_mosaic.version = 11 : i64} {
  func.func @_elsa_kernel(%arg0: i32, %arg1: i32, %arg2: memref<128x256xf32, #tpu.memory_space<vmem>>, %arg3: memref<256x128xf32, #tpu.memory_space<vmem>>, %arg4: memref<128x256xf32, #tpu.memory_space<vmem>>, %arg5: memref<128x256xf32, #tpu.memory_space<vmem>>) attributes {dimension_semantics = [#tpu.dimension_semantics<parallel>, #tpu.dimension_semantics<arbitrary>], iteration_bounds = array<i64: 1, 1>, scalar_prefetch = 0 : i64, scratch_operands = 1 : i64, tpu.core_type = #tpu.core_type<tc>, window_params = [{transform_indices = @transform_0, window_bounds = array<i64: 128, 256>}, {transform_indices = @transform_1, window_bounds = array<i64: 256, 128>}, {transform_indices = @transform_2, window_bounds = array<i64: 128, 256>}]} {
    %c0_i32 = arith.constant 0 : i32
    %0 = arith.cmpi eq, %arg1, %c0_i32 : i32
    %1 = arith.extui %0 : i1 to i32
    %c0_i32_0 = arith.constant 0 : i32
    %2 = arith.cmpi ne, %1, %c0_i32_0 : i32
    scf.if %2 {
      %cst_11 = arith.constant 0.000000e+00 : f32
      %13 = vector.broadcast %cst_11 : f32 to vector<128x256xf32>
      %c0_12 = arith.constant 0 : index
      %c0_13 = arith.constant 0 : index
      %14 = vector.load %arg5[%c0_12, %c0_13] : memref<128x256xf32, #tpu.memory_space<vmem>>, vector<128x256xf32>
      tpu.vector_store %arg5[%c0_12, %c0_13], %13 {strides = array<i32>} : memref<128x256xf32, #tpu.memory_space<vmem>>, vector<128x256xf32>,
    } else {
    }
    %c0 = arith.constant 0 : index
    %c0_1 = arith.constant 0 : index
    %3 = vector.load %arg3[%c0, %c0_1] : memref<256x128xf32, #tpu.memory_space<vmem>>, vector<256x128xf32>
    %c0_2 = arith.constant 0 : index
    %c0_3 = arith.constant 0 : index
    %4 = vector.load %arg2[%c0_2, %c0_3] : memref<128x256xf32, #tpu.memory_space<vmem>>, vector<128x256xf32>
    %cst = arith.constant dense<0.000000e+00> : vector<128x128xf32>
    %5 = tpu.matmul %4, %3, %cst {dimension_numbers = #tpu.dot_dimension_numbers<[1], [0], [0], [1], [0, 0, 1, 1], [], []>} : vector<128x256xf32>, vector<256x128xf32>, vector<128x128xf32> -> vector<128x128xf32>
    %cst_4 = arith.constant dense<0.000000e+00> : vector<128x256xf32>
    %6 = tpu.matmul %5, %3, %cst_4 {dimension_numbers = #tpu.dot_dimension_numbers<[1], [1], [0], [0], [0, 0, 1, 0], [], []>} : vector<128x128xf32>, vector<256x128xf32>, vector<128x256xf32> -> vector<128x256xf32>
    %c0_5 = arith.constant 0 : index
    %c0_6 = arith.constant 0 : index
    %7 = vector.load %arg5[%c0_5, %c0_6] : memref<128x256xf32, #tpu.memory_space<vmem>>, vector<128x256xf32>
    %8 = arith.addf %7, %6 : vector<128x256xf32>
    %c0_7 = arith.constant 0 : index
    %c0_8 = arith.constant 0 : index
    %9 = vector.load %arg5[%c0_7, %c0_8] : memref<128x256xf32, #tpu.memory_space<vmem>>, vector<128x256xf32>
    tpu.vector_store %arg5[%c0_7, %c0_8], %8 {strides = array<i32>} : memref<128x256xf32, #tpu.memory_space<vmem>>, vector<128x256xf32>,
    %c0_i32_9 = arith.constant 0 : i32
    %10 = arith.cmpi eq, %arg1, %c0_i32_9 : i32
    %11 = arith.extui %10 : i1 to i32
    %c0_i32_10 = arith.constant 0 : i32
    %12 = arith.cmpi ne, %11, %c0_i32_10 : i32
    scf.if %12 {
      %c0_11 = arith.constant 0 : index
      %c0_12 = arith.constant 0 : index
      %13 = vector.load %arg2[%c0_11, %c0_12] : memref<128x256xf32, #tpu.memory_space<vmem>>, vector<128x256xf32>
      %c0_13 = arith.constant 0 : index
      %c0_14 = arith.constant 0 : index
      %14 = vector.load %arg5[%c0_13, %c0_14] : memref<128x256xf32, #tpu.memory_space<vmem>>, vector<128x256xf32>
      %15 = arith.subf %14, %13 : vector<128x256xf32>
      %cst_15 = arith.constant 0.000000e+00 : f32
      %16 = vector.broadcast %cst_15 : f32 to vector<128x256xf32>
      %17 = arith.maximumf %15, %16 : vector<128x256xf32>
      %c0_16 = arith.constant 0 : index
      %c0_17 = arith.constant 0 : index
      %18 = vector.load %arg4[%c0_16, %c0_17] : memref<128x256xf32, #tpu.memory_space<vmem>>, vector<128x256xf32>
      tpu.vector_store %arg4[%c0_16, %c0_17], %17 {strides = array<i32>} : memref<128x256xf32, #tpu.memory_space<vmem>>, vector<128x256xf32>,
    } else {
    }
    return
  }
  func.func @transform_0(%arg0: i32, %arg1: i32) -> (i32, i32) {
    %c0_i32 = arith.constant 0 : i32
    %c0_i32_0 = arith.constant 0 : i32
    return %arg0, %c0_i32 : i32, i32
  }
  func.func @transform_1(%arg0: i32, %arg1: i32) -> (i32, i32) {
    %c0_i32 = arith.constant 0 : i32
    %c0_i32_0 = arith.constant 0 : i32
    return %c0_i32, %arg1 : i32, i32
  }
  func.func @transform_2(%arg0: i32, %arg1: i32) -> (i32, i32) {
    %c0_i32 = arith.constant 0 : i32
    %c0_i32_0 = arith.constant 0 : i32
    return %arg0, %c0_i32 : i32, i32
  }
}

</mosaic_0001>

<llo_original>
// kernel: tpu_custom_call.1
$region0: #{tpu_custom_call.1}
  #allocation0 [shape = 'u32[]', space=smem, size = 0x4, offset = 0x4, fixed_abs, tag = 'smem constant byte address 0x4 - core index']
  #allocation1 [shape = 'u32[144,128]{1,0:T(1,128)}', space=vmem, size = 0x12000, scoped, tag = 'internal scratch']
  #allocation2 [shape = 'f32[128,256]{1,0:T(8,128)}', space=vmem, size = 0x20000, scoped, tag = 'scratch operand']
  %s0 = inlined_call_operand.hbm [shape: f32[128,256], index: 0, kind: input, shape index: {}]
  %s1 = inlined_call_operand.hbm [shape: f32[256,128], index: 1, kind: input, shape index: {}]
  %s2 = inlined_call_operand.hbm [shape: f32[128,256], index: 2, kind: output, shape index: {}]
  %s3 = sld [smem:[#allocation0]]
  $region34: #{tpu_custom_call.1} parent=0
    _
  %s5 = ssub.s32 1, %s3
  %s6 = scalar_select 0, %s5, %s3
  $region1: #{tpu_custom_call.1} parent=0
    #allocation3 [shape = 'u8[131072]{0}', space=vmem, size = 0x20000, scoped, tag = 'input window, operand 0, single buffered']
    #allocation4 [shape = 's32[1]{0}', space=sflag, size = 0x4, scoped, tag = 'scoped memory for tpu_custom_call.1']
    #allocation5 [shape = 's32[1]{0}', space=sflag, size = 0x4, scoped, tag = 'scoped memory for tpu_custom_call.1']
    #allocation6 [shape = 'u8[131072]{0}', space=vmem, size = 0x20000, scoped, tag = 'input window, operand 1, single buffered']
    #allocation7 [shape = 's32[1]{0}', space=sflag, size = 0x4, scoped, tag = 'scoped memory for tpu_custom_call.1']
    #allocation8 [shape = 'u8[131072]{0}', space=vmem, size = 0x20000, scoped, tag = 'output window, operand 0, single buffered']
    %7 = vsyncpa [#allocation4], 0
    %8 = vsyncpa [#allocation7], 0
    %9 = vsyncpa [#allocation5], 0
    // Predicated region
    $region2: #{tpu_custom_call.1} parent=1 // pred_check
      _
    $region3: #{tpu_custom_call.1} parent=1 // pred_check_branch
      %11 = sbr.rel (0) target = $region5
    $region4: #{tpu_custom_call.1} parent=1 // pred_region
      %s13 = ssub.s32 4096, 4096
      %14 = vsyncadd [#allocation4], %s13
      %s15 = sshll.u32 [#allocation3], 4
      %s16 = int_to_ptr.vmem [resolvable:$true] %s15
      %21 = dma.hbm_to_vmem [thread:$0]  %s0, 4096, %s16, [#allocation4], 256, 256, 16
    $region5: #{tpu_custom_call.1} parent=1 // pred_fallthru
      _
    // Predicated region
    $region6: #{tpu_custom_call.1} parent=1 // pred_check
      _
    $region7: #{tpu_custom_call.1} parent=1 // pred_check_branch
      %23 = sbr.rel (0) target = $region9
    $region8: #{tpu_custom_call.1} parent=1 // pred_region
      %s25 = ssub.s32 4096, 4096
      %26 = vsyncadd [#allocation7], %s25
      %s27 = sshll.u32 [#allocation6], 4
      %s28 = int_to_ptr.vmem [resolvable:$true] %s27
      %33 = dma.hbm_to_vmem [thread:$0]  %s1, 4096, %s28, [#allocation7], 128, 128, 8
    $region9: #{tpu_custom_call.1} parent=1 // pred_fallthru
      _
    // Predicated region
    $region10: #{tpu_custom_call.1} parent=1 // pred_check
      _
    $region11: #{tpu_custom_call.1} parent=1 // pred_check_branch
      %35 = sbr.rel (0) target = $region13
    $region12: #{tpu_custom_call.1} parent=1 // pred_region
      %36 = dma.done [#allocation4], 4096
    $region13: #{tpu_custom_call.1} parent=1 // pred_fallthru
      _
    // Predicated region
    $region14: #{tpu_custom_call.1} parent=1 // pred_check
      _
    $region15: #{tpu_custom_call.1} parent=1 // pred_check_branch
      %38 = sbr.rel (0) target = $region17
    $region16: #{tpu_custom_call.1} parent=1 // pred_region
      %39 = dma.done [#allocation7], 4096
    $region17: #{tpu_custom_call.1} parent=1 // pred_fallthru
      _
    %p40 = scmp.eq.s32.totalorder 0, 0
    // Predicated region
    $region18: #{tpu_custom_call.1} parent=1 // pred_check
      %p41 = pneg %p40
    $region19: #{tpu_custom_call.1} parent=1 // pred_check_branch
      %43 = sbr.rel (%p41) target = $region21
    $region20: #{tpu_custom_call.1} parent=1 // pred_region
      %44 = vst [vmem:[#allocation2] sm:$0xff] 0.0
      %45 = vst [vmem:[#allocation2 + $0x8] sm:$0xff] 0.0
      %46 = vst [vmem:[#allocation2 + $0x10] sm:$0xff] 0.0
      %47 = vst [vmem:[#allocation2 + $0x18] sm:$0xff] 0.0
      %48 = vst [vmem:[#allocation2 + $0x20] sm:$0xff] 0.0
      %49 = vst [vmem:[#allocation2 + $0x28] sm:$0xff] 0.0
      %50 = vst [vmem:[#allocation2 + $0x30] sm:$0xff] 0.0
      %51 = vst [vmem:[#allocation2 + $0x38] sm:$0xff] 0.0
      %52 = vst [vmem:[#allocation2 + $0x40] sm:$0xff] 0.0
      %53 = vst [vmem:[#allocation2 + $0x48] sm:$0xff] 0.0
      %54 = vst [vmem:[#allocation2 + $0x50] sm:$0xff] 0.0
      %55 = vst [vmem:[#allocation2 + $0x58] sm:$0xff] 0.0
      %56 = vst [vmem:[#allocation2 + $0x60] sm:$0xff] 0.0
      %57 = vst [vmem:[#allocation2 + $0x68] sm:$0xff] 0.0
      %58 = vst [vmem:[#allocation2 + $0x70] sm:$0xff] 0.0
      %59 = vst [vmem:[#allocation2 + $0x78] sm:$0xff] 0.0
      %60 = vst [vmem:[#allocation2 + $0x80] sm:$0xff] 0.0
      %61 = vst [vmem:[#allocation2 + $0x88] sm:$0xff] 0.0
      %62 = vst [vmem:[#allocation2 + $0x90] sm:$0xff] 0.0
      %63 = vst [vmem:[#allocation2 + $0x98] sm:$0xff] 0.0
      %64 = vst [vmem:[#allocation2 + $0xa0] sm:$0xff] 0.0
      %65 = vst [vmem:[#allocation2 + $0xa8] sm:$0xff] 0.0
      %66 = vst [vmem:[#allocation2 + $0xb0] sm:$0xff] 0.0
      %67 = vst [vmem:[#allocation2 + $0xb8] sm:$0xff] 0.0
      %68 = vst [vmem:[#allocation2 + $0xc0] sm:$0xff] 0.0
      %69 = vst [vmem:[#allocation2 + $0xc8] sm:$0xff] 0.0
      %70 = vst [vmem:[#allocation2 + $0xd0] sm:$0xff] 0.0
      %71 = vst [vmem:[#allocation2 + $0xd8] sm:$0xff] 0.0
      %72 = vst [vmem:[#allocation2 + $0xe0] sm:$0xff] 0.0
      %73 = vst [vmem:[#allocation2 + $0xe8] sm:$0xff] 0.0
      %74 = vst [vmem:[#allocation2 + $0xf0] sm:$0xff] 0.0
      %75 = vst [vmem:[#allocation2 + $0xf8] sm:$0xff] 0.0
    $region21: #{tpu_custom_call.1} parent=1 // pred_fallthru
      _
    %v76 = vld [vmem:[#allocation6] sm:$0xff]
    %v77 = vld [vmem:[#allocation6 + $0x8] sm:$0xff]
    %v78 = vld [vmem:[#allocation6 + $0x10] sm:$0xff]
    %v79 = vld [vmem:[#allocation6 + $0x18] sm:$0xff]
    %v80 = vld [vmem:[#allocation6 + $0x20] sm:$0xff]
    %v81 = vld [vmem:[#allocation6 + $0x28] sm:$0xff]
    %v82 = vld [vmem:[#allocation6 + $0x30] sm:$0xff]
    %v83 = vld [vmem:[#allocation6 + $0x38] sm:$0xff]
    %v84 = vld [vmem:[#allocation6 + $0x40] sm:$0xff]
    %v85 = vld [vmem:[#allocation6 + $0x48] sm:$0xff]
    %v86 = vld [vmem:[#allocation6 + $0x50] sm:$0xff]
    %v87 = vld [vmem:[#allocation6 + $0x58] sm:$0xff]
    %v88 = vld [vmem:[#allocation6 + $0x60] sm:$0xff]
    %v89 = vld [vmem:[#allocation6 + $0x68] sm:$0xff]
    %v90 = vld [vmem:[#allocation6 + $0x70] sm:$0xff]
    %v91 = vld [vmem:[#allocation6 + $0x78] sm:$0xff]
    %v92 = vld [vmem:[#allocation6 + $0x80] sm:$0xff]
    %v93 = vld [vmem:[#allocation6 + $0x88] sm:$0xff]
    %v94 = vld [vmem:[#allocation6 + $0x90] sm:$0xff]
    %v95 = vld [vmem:[#allocation6 + $0x98] sm:$0xff]
    %v96 = vld [vmem:[#allocation6 + $0xa0] sm:$0xff]
    %v97 = vld [vmem:[#allocation6 + $0xa8] sm:$0xff]
    %v98 = vld [vmem:[#allocation6 + $0xb0] sm:$0xff]
    %v99 = vld [vmem:[#allocation6 + $0xb8] sm:$0xff]
    %v100 = vld [vmem:[#allocation6 + $0xc0] sm:$0xff]
    %v101 = vld [vmem:[#allocation6 + $0xc8] sm:$0xff]
    %v102 = vld [vmem:[#allocation6 + $0xd0] sm:$0xff]
    %v103 = vld [vmem:[#allocation6 + $0xd8] sm:$0xff]
    %v104 = vld [vmem:[#allocation6 + $0xe0] sm:$0xff]
    %v105 = vld [vmem:[#allocation6 + $0xe8] sm:$0xff]
    %v106 = vld [vmem:[#allocation6 + $0xf0] sm:$0xff]
    %v107 = vld [vmem:[#allocation6 + $0xf8] sm:$0xff]
    %v108 = vld [vmem:[#allocation3] sm:$0xff]
    %v109 = vld [vmem:[#allocation3 + $0x8] sm:$0xff]
    %v110 = vld [vmem:[#allocation3 + $0x10] sm:$0xff]
    %v111 = vld [vmem:[#allocation3 + $0x18] sm:$0xff]
    %v112 = vld [vmem:[#allocation3 + $0x20] sm:$0xff]
    %v113 = vld [vmem:[#allocation3 + $0x28] sm:$0xff]
    %v114 = vld [vmem:[#allocation3 + $0x30] sm:$0xff]
    %v115 = vld [vmem:[#allocation3 + $0x38] sm:$0xff]
    %v116 = vld [vmem:[#allocation3 + $0x40] sm:$0xff]
    %v117 = vld [vmem:[#allocation3 + $0x48] sm:$0xff]
    %v118 = vld [vmem:[#allocation3 + $0x50] sm:$0xff]
    %v119 = vld [vmem:[#allocation3 + $0x58] sm:$0xff]
    %v120 = vld [vmem:[#allocation3 + $0x60] sm:$0xff]
    %v121 = vld [vmem:[#allocation3 + $0x68] sm:$0xff]
    %v122 = vld [vmem:[#allocation3 + $0x70] sm:$0xff]
    %v123 = vld [vmem:[#allocation3 + $0x78] sm:$0xff]
    %v124 = vld [vmem:[#allocation3 + $0x80] sm:$0xff]
    %v125 = vld [vmem:[#allocation3 + $0x88] sm:$0xff]
    %v126 = vld [vmem:[#allocation3 + $0x90] sm:$0xff]
    %v127 = vld [vmem:[#allocation3 + $0x98] sm:$0xff]
    %v128 = vld [vmem:[#allocation3 + $0xa0] sm:$0xff]
    %v129 = vld [vmem:[#allocation3 + $0xa8] sm:$0xff]
    %v130 = vld [vmem:[#allocation3 + $0xb0] sm:$0xff]
    %v131 = vld [vmem:[#allocation3 + $0xb8] sm:$0xff]
    %v132 = vld [vmem:[#allocation3 + $0xc0] sm:$0xff]
    %v133 = vld [vmem:[#allocation3 + $0xc8] sm:$0xff]
    %v134 = vld [vmem:[#allocation3 + $0xd0] sm:$0xff]
    %v135 = vld [vmem:[#allocation3 + $0xd8] sm:$0xff]
    %v136 = vld [vmem:[#allocation3 + $0xe0] sm:$0xff]
    %v137 = vld [vmem:[#allocation3 + $0xe8] sm:$0xff]
    %v138 = vld [vmem:[#allocation3 + $0xf0] sm:$0xff]
    %v139 = vld [vmem:[#allocation3 + $0xf8] sm:$0xff]
    %140 = vmatprep.subr.mxu0 0.0
    %141 = vmatpush1.msra.mxu0 %v91
    %142 = vmatprep.subr.mxu0 0.0
    %143 = vmatpush1.msra.mxu0 %v90
    %144 = vmatprep.subr.mxu0 0.0
    %145 = vmatpush1.msra.mxu0 %v89
    %146 = vmatprep.subr.mxu0 0.0
    %147 = vmatpush1.msra.mxu0 %v88
    %148 = vmatprep.subr.mxu0 0.0
    %149 = vmatpush1.msra.mxu0 %v87
    %150 = vmatprep.subr.mxu0 0.0
    %151 = vmatpush1.msra.mxu0 %v86
    %152 = vmatprep.subr.mxu0 0.0
    %153 = vmatpush1.msra.mxu0 %v85
    %154 = vmatprep.subr.mxu0 0.0
    %155 = vmatpush1.msra.mxu0 %v84
    %156 = vmatprep.subr.mxu0 0.0
    %157 = vmatpush1.msra.mxu0 %v83
    %158 = vmatprep.subr.mxu0 0.0
    %159 = vmatpush1.msra.mxu0 %v82
    %160 = vmatprep.subr.mxu0 0.0
    %161 = vmatpush1.msra.mxu0 %v81
    %162 = vmatprep.subr.mxu0 0.0
    %163 = vmatpush1.msra.mxu0 %v80
    %164 = vmatprep.subr.mxu0 0.0
    %165 = vmatpush1.msra.mxu0 %v79
    %166 = vmatprep.subr.mxu0 0.0
    %167 = vmatpush1.msra.mxu0 %v78
    %168 = vmatprep.subr.mxu0 0.0
    %169 = vmatpush1.msra.mxu0 %v77
    %170 = vmatprep.subr.mxu0 0.0
    %171 = vmatpush1.msra.mxu0 %v76
    %172 = vmatprep.subr.mxu0 0.0
    %173 = vmatpush2.msra.mxu0 %v107
    %174 = vmatprep.subr.mxu0 0.0
    %175 = vmatpush2.msra.mxu0 %v106
    %176 = vmatprep.subr.mxu0 0.0
    %177 = vmatpush2.msra.mxu0 %v105
    %178 = vmatprep.subr.mxu0 0.0
    %179 = vmatpush2.msra.mxu0 %v104
    %180 = vmatprep.subr.mxu0 0.0
    %181 = vmatpush2.msra.mxu0 %v103
    %182 = vmatprep.subr.mxu0 0.0
    %183 = vmatpush2.msra.mxu0 %v102
    %184 = vmatprep.subr.mxu0 0.0
    %185 = vmatpush2.msra.mxu0 %v101
    %186 = vmatprep.subr.mxu0 0.0
    %187 = vmatpush2.msra.mxu0 %v100
    %188 = vmatprep.subr.mxu0 0.0
    %189 = vmatpush2.msra.mxu0 %v99
    %190 = vmatprep.subr.mxu0 0.0
    %191 = vmatpush2.msra.mxu0 %v98
    %192 = vmatprep.subr.mxu0 0.0
    %193 = vmatpush2.msra.mxu0 %v97
    %194 = vmatprep.subr.mxu0 0.0
    %195 = vmatpush2.msra.mxu0 %v96
    %196 = vmatprep.subr.mxu0 0.0
    %197 = vmatpush2.msra.mxu0 %v95
    %198 = vmatprep.subr.mxu0 0.0
    %199 = vmatpush2.msra.mxu0 %v94
    %200 = vmatprep.subr.mxu0 0.0
    %201 = vmatpush2.msra.mxu0 %v93
    %202 = vmatprep.subr.mxu0 0.0
    %203 = vmatpush2.msra.mxu0 %v92
    %204 = vmatprep.mubr.f32.mxu0 %v109
    %205 = vmatmul.mubr.f32.gmra.mxu0 %v108
    %v206 = vpop.f32.mrf.mxu0
    %v207 = vadd.f32 0.0, %v206
    %v208 = vpop.f32.mrf.mxu0
    %209 = vmatprep.mubr.f32.mxu0 %v111
    %210 = vmatmul.mubr.f32.gmra.mxu0 %v110
    %v211 = vpop.f32.mrf.mxu0
    %v212 = vadd.f32 0.0, %v211
    %v213 = vpop.f32.mrf.mxu0
    %214 = vmatprep.mubr.f32.mxu0 %v113
    %215 = vmatmul.mubr.f32.gmra.mxu0 %v112
    %v216 = vpop.f32.mrf.mxu0
    %v217 = vadd.f32 0.0, %v216
    %v218 = vpop.f32.mrf.mxu0
    %219 = vmatprep.mubr.f32.mxu0 %v115
    %220 = vmatmul.mubr.f32.gmra.mxu0 %v114
    %v221 = vpop.f32.mrf.mxu0
    %v222 = vadd.f32 0.0, %v221
    %v223 = vpop.f32.mrf.mxu0
    %224 = vmatprep.mubr.f32.mxu0 %v117
    %225 = vmatmul.mubr.f32.gmra.mxu0 %v116
    %v226 = vpop.f32.mrf.mxu0
    %v227 = vadd.f32 0.0, %v226
    %v228 = vpop.f32.mrf.mxu0
    %229 = vmatprep.mubr.f32.mxu0 %v119
    %230 = vmatmul.mubr.f32.gmra.mxu0 %v118
    %v231 = vpop.f32.mrf.mxu0
    %v232 = vadd.f32 0.0, %v231
    %v233 = vpop.f32.mrf.mxu0
    %234 = vmatprep.mubr.f32.mxu0 %v121
    %235 = vmatmul.mubr.f32.gmra.mxu0 %v120
    %v236 = vpop.f32.mrf.mxu0
    %v237 = vadd.f32 0.0, %v236
    %v238 = vpop.f32.mrf.mxu0
    %239 = vmatprep.mubr.f32.mxu0 %v123
    %240 = vmatmul.mubr.f32.gmra.mxu0 %v122
    %v241 = vpop.f32.mrf.mxu0
    %v242 = vadd.f32 0.0, %v241
    %v243 = vpop.f32.mrf.mxu0
    %244 = vmatprep.mubr.f32.mxu0 %v125
    %245 = vmatmul.mubr.f32.gmra.mxu0 %v124
    %v246 = vpop.f32.mrf.mxu0
    %v247 = vadd.f32 0.0, %v246
    %v248 = vpop.f32.mrf.mxu0
    %249 = vmatprep.mubr.f32.mxu0 %v127
    %250 = vmatmul.mubr.f32.gmra.mxu0 %v126
    %v251 = vpop.f32.mrf.mxu0
    %v252 = vadd.f32 0.0, %v251
    %v253 = vpop.f32.mrf.mxu0
    %254 = vmatprep.mubr.f32.mxu0 %v129
    %255 = vmatmul.mubr.f32.gmra.mxu0 %v128
    %v256 = vpop.f32.mrf.mxu0
    %v257 = vadd.f32 0.0, %v256
    %v258 = vpop.f32.mrf.mxu0
    %259 = vmatprep.mubr.f32.mxu0 %v131
    %260 = vmatmul.mubr.f32.gmra.mxu0 %v130
    %v261 = vpop.f32.mrf.mxu0
    %v262 = vadd.f32 0.0, %v261
    %v263 = vpop.f32.mrf.mxu0
    %264 = vmatprep.mubr.f32.mxu0 %v133
    %265 = vmatmul.mubr.f32.gmra.mxu0 %v132
    %v266 = vpop.f32.mrf.mxu0
    %v267 = vadd.f32 0.0, %v266
    %v268 = vpop.f32.mrf.mxu0
    %269 = vmatprep.mubr.f32.mxu0 %v135
    %270 = vmatmul.mubr.f32.gmra.mxu0 %v134
    %v271 = vpop.f32.mrf.mxu0
    %v272 = vadd.f32 0.0, %v271
    %v273 = vpop.f32.mrf.mxu0
    %274 = vmatprep.mubr.f32.mxu0 %v137
    %275 = vmatmul.mubr.f32.gmra.mxu0 %v136
    %v276 = vpop.f32.mrf.mxu0
    %v277 = vadd.f32 0.0, %v276
    %v278 = vpop.f32.mrf.mxu0
    %279 = vmatprep.mubr.f32.mxu0 %v139
    %280 = vmatmul.mubr.f32.gmra.mxu0 %v138
    %v281 = vpop.f32.mrf.mxu0
    %v282 = vadd.f32 0.0, %v281
    %v283 = vpop.f32.mrf.mxu0
    %284 = vdwg.mxu0
    %285 = vmatprep.subr.mxu0 0.0
    %286 = vmatpush1.xpose.msra.mxu0 %v91
    %287 = vmatprep.subr.mxu0 0.0
    %288 = vmatpush1.xpose.msra.mxu0 %v90
    %289 = vmatprep.subr.mxu0 0.0
    %290 = vmatpush1.xpose.msra.mxu0 %v89
    %291 = vmatprep.subr.mxu0 0.0
    %292 = vmatpush1.xpose.msra.mxu0 %v88
    %293 = vmatprep.subr.mxu0 0.0
    %294 = vmatpush1.xpose.msra.mxu0 %v87
    %295 = vmatprep.subr.mxu0 0.0
    %296 = vmatpush1.xpose.msra.mxu0 %v86
    %297 = vmatprep.subr.mxu0 0.0
    %298 = vmatpush1.xpose.msra.mxu0 %v85
    %299 = vmatprep.subr.mxu0 0.0
    %300 = vmatpush1.xpose.msra.mxu0 %v84
    %301 = vmatprep.subr.mxu0 0.0
    %302 = vmatpush1.xpose.msra.mxu0 %v83
    %303 = vmatprep.subr.mxu0 0.0
    %304 = vmatpush1.xpose.msra.mxu0 %v82
    %305 = vmatprep.subr.mxu0 0.0
    %306 = vmatpush1.xpose.msra.mxu0 %v81
    %307 = vmatprep.subr.mxu0 0.0
    %308 = vmatpush1.xpose.msra.mxu0 %v80
    %309 = vmatprep.subr.mxu0 0.0
    %310 = vmatpush1.xpose.msra.mxu0 %v79
    %311 = vmatprep.subr.mxu0 0.0
    %312 = vmatpush1.xpose.msra.mxu0 %v78
    %313 = vmatprep.subr.mxu0 0.0
    %314 = vmatpush1.xpose.msra.mxu0 %v77
    %315 = vmatprep.subr.mxu0 0.0
    %316 = vmatpush1.xpose.msra.mxu0 %v76
    %317 = vmatprep.subr.mxu0 0.0
    %318 = vmatpush2.xpose.msra.mxu0 %v107
    %319 = vmatprep.subr.mxu0 0.0
    %320 = vmatpush2.xpose.msra.mxu0 %v106
    %321 = vmatprep.subr.mxu0 0.0
    %322 = vmatpush2.xpose.msra.mxu0 %v105
    %323 = vmatprep.subr.mxu0 0.0
    %324 = vmatpush2.xpose.msra.mxu0 %v104
    %325 = vmatprep.subr.mxu0 0.0
    %326 = vmatpush2.xpose.msra.mxu0 %v103
    %327 = vmatprep.subr.mxu0 0.0
    %328 = vmatpush2.xpose.msra.mxu0 %v102
    %329 = vmatprep.subr.mxu0 0.0
    %330 = vmatpush2.xpose.msra.mxu0 %v101
    %331 = vmatprep.subr.mxu0 0.0
    %332 = vmatpush2.xpose.msra.mxu0 %v100
    %333 = vmatprep.subr.mxu0 0.0
    %334 = vmatpush2.xpose.msra.mxu0 %v99
    %335 = vmatprep.subr.mxu0 0.0
    %336 = vmatpush2.xpose.msra.mxu0 %v98
    %337 = vmatprep.subr.mxu0 0.0
    %338 = vmatpush2.xpose.msra.mxu0 %v97
    %339 = vmatprep.subr.mxu0 0.0
    %340 = vmatpush2.xpose.msra.mxu0 %v96
    %341 = vmatprep.subr.mxu0 0.0
    %342 = vmatpush2.xpose.msra.mxu0 %v95
    %343 = vmatprep.subr.mxu0 0.0
    %344 = vmatpush2.xpose.msra.mxu0 %v94
    %345 = vmatprep.subr.mxu0 0.0
    %346 = vmatpush2.xpose.msra.mxu0 %v93
    %347 = vmatprep.subr.mxu0 0.0
    %348 = vmatpush2.xpose.msra.mxu0 %v92
    %349 = vmatprep.mubr.f32.mxu0 0.0
    %350 = vmatmul.mubr.f32.gmra.mxu0 %v207
    %v351 = vpop.f32.mrf.mxu0
    %v352 = vadd.f32 0.0, %v351
    %v353 = vpop.f32.mrf.mxu0
    %v354 = vadd.f32 0.0, %v353
    %355 = vmatprep.mubr.f32.mxu0 0.0
    %356 = vmatmul.mubr.f32.gmra.mxu0 %v212
    %v357 = vpop.f32.mrf.mxu0
    %v358 = vadd.f32 0.0, %v357
    %v359 = vpop.f32.mrf.mxu0
    %v360 = vadd.f32 0.0, %v359
    %361 = vmatprep.mubr.f32.mxu0 0.0
    %362 = vmatmul.mubr.f32.gmra.mxu0 %v217
    %v363 = vpop.f32.mrf.mxu0
    %v364 = vadd.f32 0.0, %v363
    %v365 = vpop.f32.mrf.mxu0
    %v366 = vadd.f32 0.0, %v365
    %367 = vmatprep.mubr.f32.mxu0 0.0
    %368 = vmatmul.mubr.f32.gmra.mxu0 %v222
    %v369 = vpop.f32.mrf.mxu0
    %v370 = vadd.f32 0.0, %v369
    %v371 = vpop.f32.mrf.mxu0
    %v372 = vadd.f32 0.0, %v371
    %373 = vmatprep.mubr.f32.mxu0 0.0
    %374 = vmatmul.mubr.f32.gmra.mxu0 %v227
    %v375 = vpop.f32.mrf.mxu0
    %v376 = vadd.f32 0.0, %v375
    %v377 = vpop.f32.mrf.mxu0
    %v378 = vadd.f32 0.0, %v377
    %379 = vmatprep.mubr.f32.mxu0 0.0
    %380 = vmatmul.mubr.f32.gmra.mxu0 %v232
    %v381 = vpop.f32.mrf.mxu0
    %v382 = vadd.f32 0.0, %v381
    %v383 = vpop.f32.mrf.mxu0
    %v384 = vadd.f32 0.0, %v383
    %385 = vmatprep.mubr.f32.mxu0 0.0
    %386 = vmatmul.mubr.f32.gmra.mxu0 %v237
    %v387 = vpop.f32.mrf.mxu0
    %v388 = vadd.f32 0.0, %v387
    %v389 = vpop.f32.mrf.mxu0
    %v390 = vadd.f32 0.0, %v389
    %391 = vmatprep.mubr.f32.mxu0 0.0
    %392 = vmatmul.mubr.f32.gmra.mxu0 %v242
    %v393 = vpop.f32.mrf.mxu0
    %v394 = vadd.f32 0.0, %v393
    %v395 = vpop.f32.mrf.mxu0
    %v396 = vadd.f32 0.0, %v395
    %397 = vmatprep.mubr.f32.mxu0 0.0
    %398 = vmatmul.mubr.f32.gmra.mxu0 %v247
    %v399 = vpop.f32.mrf.mxu0
    %v400 = vadd.f32 0.0, %v399
    %v401 = vpop.f32.mrf.mxu0
    %v402 = vadd.f32 0.0, %v401
    %403 = vmatprep.mubr.f32.mxu0 0.0
    %404 = vmatmul.mubr.f32.gmra.mxu0 %v252
    %v405 = vpop.f32.mrf.mxu0
    %v406 = vadd.f32 0.0, %v405
    %v407 = vpop.f32.mrf.mxu0
    %v408 = vadd.f32 0.0, %v407
    %409 = vmatprep.mubr.f32.mxu0 0.0
    %410 = vmatmul.mubr.f32.gmra.mxu0 %v257
    %v411 = vpop.f32.mrf.mxu0
    %v412 = vadd.f32 0.0, %v411
    %v413 = vpop.f32.mrf.mxu0
    %v414 = vadd.f32 0.0, %v413
    %415 = vmatprep.mubr.f32.mxu0 0.0
    %416 = vmatmul.mubr.f32.gmra.mxu0 %v262
    %v417 = vpop.f32.mrf.mxu0
    %v418 = vadd.f32 0.0, %v417
    %v419 = vpop.f32.mrf.mxu0
    %v420 = vadd.f32 0.0, %v419
    %421 = vmatprep.mubr.f32.mxu0 0.0
    %422 = vmatmul.mubr.f32.gmra.mxu0 %v267
    %v423 = vpop.f32.mrf.mxu0
    %v424 = vadd.f32 0.0, %v423
    %v425 = vpop.f32.mrf.mxu0
    %v426 = vadd.f32 0.0, %v425
    %427 = vmatprep.mubr.f32.mxu0 0.0
    %428 = vmatmul.mubr.f32.gmra.mxu0 %v272
    %v429 = vpop.f32.mrf.mxu0
    %v430 = vadd.f32 0.0, %v429
    %v431 = vpop.f32.mrf.mxu0
    %v432 = vadd.f32 0.0, %v431
    %433 = vmatprep.mubr.f32.mxu0 0.0
    %434 = vmatmul.mubr.f32.gmra.mxu0 %v277
    %v435 = vpop.f32.mrf.mxu0
    %v436 = vadd.f32 0.0, %v435
    %v437 = vpop.f32.mrf.mxu0
    %v438 = vadd.f32 0.0, %v437
    %439 = vmatprep.mubr.f32.mxu0 0.0
    %440 = vmatmul.mubr.f32.gmra.mxu0 %v282
    %v441 = vpop.f32.mrf.mxu0
    %v442 = vadd.f32 0.0, %v441
    %v443 = vpop.f32.mrf.mxu0
    %v444 = vadd.f32 0.0, %v443
    %445 = vdwg.mxu0
    %v446 = vld [vmem:[#allocation2] sm:$0xff]
    %v447 = vld [vmem:[#allocation2 + $0x8] sm:$0xff]
    %v448 = vld [vmem:[#allocation2 + $0x10] sm:$0xff]
    %v449 = vld [vmem:[#allocation2 + $0x18] sm:$0xff]
    %v450 = vld [vmem:[#allocation2 + $0x20] sm:$0xff]
    %v451 = vld [vmem:[#allocation2 + $0x28] sm:$0xff]
    %v452 = vld [vmem:[#allocation2 + $0x30] sm:$0xff]
    %v453 = vld [vmem:[#allocation2 + $0x38] sm:$0xff]
    %v454 = vld [vmem:[#allocation2 + $0x40] sm:$0xff]
    %v455 = vld [vmem:[#allocation2 + $0x48] sm:$0xff]
    %v456 = vld [vmem:[#allocation2 + $0x50] sm:$0xff]
    %v457 = vld [vmem:[#allocation2 + $0x58] sm:$0xff]
    %v458 = vld [vmem:[#allocation2 + $0x60] sm:$0xff]
    %v459 = vld [vmem:[#allocation2 + $0x68] sm:$0xff]
    %v460 = vld [vmem:[#allocation2 + $0x70] sm:$0xff]
    %v461 = vld [vmem:[#allocation2 + $0x78] sm:$0xff]
    %v462 = vld [vmem:[#allocation2 + $0x80] sm:$0xff]
    %v463 = vld [vmem:[#allocation2 + $0x88] sm:$0xff]
    %v464 = vld [vmem:[#allocation2 + $0x90] sm:$0xff]
    %v465 = vld [vmem:[#allocation2 + $0x98] sm:$0xff]
    %v466 = vld [vmem:[#allocation2 + $0xa0] sm:$0xff]
    %v467 = vld [vmem:[#allocation2 + $0xa8] sm:$0xff]
    %v468 = vld [vmem:[#allocation2 + $0xb0] sm:$0xff]
    %v469 = vld [vmem:[#allocation2 + $0xb8] sm:$0xff]
    %v470 = vld [vmem:[#allocation2 + $0xc0] sm:$0xff]
    %v471 = vld [vmem:[#allocation2 + $0xc8] sm:$0xff]
    %v472 = vld [vmem:[#allocation2 + $0xd0] sm:$0xff]
    %v473 = vld [vmem:[#allocation2 + $0xd8] sm:$0xff]
    %v474 = vld [vmem:[#allocation2 + $0xe0] sm:$0xff]
    %v475 = vld [vmem:[#allocation2 + $0xe8] sm:$0xff]
    %v476 = vld [vmem:[#allocation2 + $0xf0] sm:$0xff]
    %v477 = vld [vmem:[#allocation2 + $0xf8] sm:$0xff]
    %v478 = vadd.f32 %v446, %v352
    %v479 = vadd.f32 %v447, %v354
    %v480 = vadd.f32 %v448, %v358
    %v481 = vadd.f32 %v449, %v360
    %v482 = vadd.f32 %v450, %v364
    %v483 = vadd.f32 %v451, %v366
    %v484 = vadd.f32 %v452, %v370
    %v485 = vadd.f32 %v453, %v372
    %v486 = vadd.f32 %v454, %v376
    %v487 = vadd.f32 %v455, %v378
    %v488 = vadd.f32 %v456, %v382
    %v489 = vadd.f32 %v457, %v384
    %v490 = vadd.f32 %v458, %v388
    %v491 = vadd.f32 %v459, %v390
    %v492 = vadd.f32 %v460, %v394
    %v493 = vadd.f32 %v461, %v396
    %v494 = vadd.f32 %v462, %v400
    %v495 = vadd.f32 %v463, %v402
    %v496 = vadd.f32 %v464, %v406
    %v497 = vadd.f32 %v465, %v408
    %v498 = vadd.f32 %v466, %v412
    %v499 = vadd.f32 %v467, %v414
    %v500 = vadd.f32 %v468, %v418
    %v501 = vadd.f32 %v469, %v420
    %v502 = vadd.f32 %v470, %v424
    %v503 = vadd.f32 %v471, %v426
    %v504 = vadd.f32 %v472, %v430
    %v505 = vadd.f32 %v473, %v432
    %v506 = vadd.f32 %v474, %v436
    %v507 = vadd.f32 %v475, %v438
    %v508 = vadd.f32 %v476, %v442
    %v509 = vadd.f32 %v477, %v444
    %510 = vst [vmem:[#allocation2] sm:$0xff] %v478
    %511 = vst [vmem:[#allocation2 + $0x8] sm:$0xff] %v479
    %512 = vst [vmem:[#allocation2 + $0x10] sm:$0xff] %v480
    %513 = vst [vmem:[#allocation2 + $0x18] sm:$0xff] %v481
    %514 = vst [vmem:[#allocation2 + $0x20] sm:$0xff] %v482
    %515 = vst [vmem:[#allocation2 + $0x28] sm:$0xff] %v483
    %516 = vst [vmem:[#allocation2 + $0x30] sm:$0xff] %v484
    %517 = vst [vmem:[#allocation2 + $0x38] sm:$0xff] %v485
    %518 = vst [vmem:[#allocation2 + $0x40] sm:$0xff] %v486
    %519 = vst [vmem:[#allocation2 + $0x48] sm:$0xff] %v487
    %520 = vst [vmem:[#allocation2 + $0x50] sm:$0xff] %v488
    %521 = vst [vmem:[#allocation2 + $0x58] sm:$0xff] %v489
    %522 = vst [vmem:[#allocation2 + $0x60] sm:$0xff] %v490
    %523 = vst [vmem:[#allocation2 + $0x68] sm:$0xff] %v491
    %524 = vst [vmem:[#allocation2 + $0x70] sm:$0xff] %v492
    %525 = vst [vmem:[#allocation2 + $0x78] sm:$0xff] %v493
    %526 = vst [vmem:[#allocation2 + $0x80] sm:$0xff] %v494
    %527 = vst [vmem:[#allocation2 + $0x88] sm:$0xff] %v495
    %528 = vst [vmem:[#allocation2 + $0x90] sm:$0xff] %v496
    %529 = vst [vmem:[#allocation2 + $0x98] sm:$0xff] %v497
    %530 = vst [vmem:[#allocation2 + $0xa0] sm:$0xff] %v498
    %531 = vst [vmem:[#allocation2 + $0xa8] sm:$0xff] %v499
    %532 = vst [vmem:[#allocation2 + $0xb0] sm:$0xff] %v500
    %533 = vst [vmem:[#allocation2 + $0xb8] sm:$0xff] %v501
    %534 = vst [vmem:[#allocation2 + $0xc0] sm:$0xff] %v502
    %535 = vst [vmem:[#allocation2 + $0xc8] sm:$0xff] %v503
    %536 = vst [vmem:[#allocation2 + $0xd0] sm:$0xff] %v504
    %537 = vst [vmem:[#allocation2 + $0xd8] sm:$0xff] %v505
    %538 = vst [vmem:[#allocation2 + $0xe0] sm:$0xff] %v506
    %539 = vst [vmem:[#allocation2 + $0xe8] sm:$0xff] %v507
    %540 = vst [vmem:[#allocation2 + $0xf0] sm:$0xff] %v508
    %541 = vst [vmem:[#allocation2 + $0xf8] sm:$0xff] %v509
    // Predicated region
    $region22: #{tpu_custom_call.1} parent=1 // pred_check
      %p542 = pneg %p40
    $region23: #{tpu_custom_call.1} parent=1 // pred_check_branch
      %544 = sbr.rel (%p542) target = $region25
    $region24: #{tpu_custom_call.1} parent=1 // pred_region
      %v545 = vld [vmem:[#allocation3] sm:$0xff]
      %v546 = vld [vmem:[#allocation3 + $0x8] sm:$0xff]
      %v547 = vld [vmem:[#allocation3 + $0x10] sm:$0xff]
      %v548 = vld [vmem:[#allocation3 + $0x18] sm:$0xff]
      %v549 = vld [vmem:[#allocation3 + $0x20] sm:$0xff]
      %v550 = vld [vmem:[#allocation3 + $0x28] sm:$0xff]
      %v551 = vld [vmem:[#allocation3 + $0x30] sm:$0xff]
      %v552 = vld [vmem:[#allocation3 + $0x38] sm:$0xff]
      %v553 = vld [vmem:[#allocation3 + $0x40] sm:$0xff]
      %v554 = vld [vmem:[#allocation3 + $0x48] sm:$0xff]
      %v555 = vld [vmem:[#allocation3 + $0x50] sm:$0xff]
      %v556 = vld [vmem:[#allocation3 + $0x58] sm:$0xff]
      %v557 = vld [vmem:[#allocation3 + $0x60] sm:$0xff]
      %v558 = vld [vmem:[#allocation3 + $0x68] sm:$0xff]
      %v559 = vld [vmem:[#allocation3 + $0x70] sm:$0xff]
      %v560 = vld [vmem:[#allocation3 + $0x78] sm:$0xff]
      %v561 = vld [vmem:[#allocation3 + $0x80] sm:$0xff]
      %v562 = vld [vmem:[#allocation3 + $0x88] sm:$0xff]
      %v563 = vld [vmem:[#allocation3 + $0x90] sm:$0xff]
      %v564 = vld [vmem:[#allocation3 + $0x98] sm:$0xff]
      %v565 = vld [vmem:[#allocation3 + $0xa0] sm:$0xff]
      %v566 = vld [vmem:[#allocation3 + $0xa8] sm:$0xff]
      %v567 = vld [vmem:[#allocation3 + $0xb0] sm:$0xff]
      %v568 = vld [vmem:[#allocation3 + $0xb8] sm:$0xff]
      %v569 = vld [vmem:[#allocation3 + $0xc0] sm:$0xff]
      %v570 = vld [vmem:[#allocation3 + $0xc8] sm:$0xff]
      %v571 = vld [vmem:[#allocation3 + $0xd0] sm:$0xff]
      %v572 = vld [vmem:[#allocation3 + $0xd8] sm:$0xff]
      %v573 = vld [vmem:[#allocation3 + $0xe0] sm:$0xff]
      %v574 = vld [vmem:[#allocation3 + $0xe8] sm:$0xff]
      %v575 = vld [vmem:[#allocation3 + $0xf0] sm:$0xff]
      %v576 = vld [vmem:[#allocation3 + $0xf8] sm:$0xff]
      %v577 = vld [vmem:[#allocation2] sm:$0xff]
      %v578 = vld [vmem:[#allocation2 + $0x8] sm:$0xff]
      %v579 = vld [vmem:[#allocation2 + $0x10] sm:$0xff]
      %v580 = vld [vmem:[#allocation2 + $0x18] sm:$0xff]
      %v581 = vld [vmem:[#allocation2 + $0x20] sm:$0xff]
      %v582 = vld [vmem:[#allocation2 + $0x28] sm:$0xff]
      %v583 = vld [vmem:[#allocation2 + $0x30] sm:$0xff]
      %v584 = vld [vmem:[#allocation2 + $0x38] sm:$0xff]
      %v585 = vld [vmem:[#allocation2 + $0x40] sm:$0xff]
      %v586 = vld [vmem:[#allocation2 + $0x48] sm:$0xff]
      %v587 = vld [vmem:[#allocation2 + $0x50] sm:$0xff]
      %v588 = vld [vmem:[#allocation2 + $0x58] sm:$0xff]
      %v589 = vld [vmem:[#allocation2 + $0x60] sm:$0xff]
      %v590 = vld [vmem:[#allocation2 + $0x68] sm:$0xff]
      %v591 = vld [vmem:[#allocation2 + $0x70] sm:$0xff]
      %v592 = vld [vmem:[#allocation2 + $0x78] sm:$0xff]
      %v593 = vld [vmem:[#allocation2 + $0x80] sm:$0xff]
      %v594 = vld [vmem:[#allocation2 + $0x88] sm:$0xff]
      %v595 = vld [vmem:[#allocation2 + $0x90] sm:$0xff]
      %v596 = vld [vmem:[#allocation2 + $0x98] sm:$0xff]
      %v597 = vld [vmem:[#allocation2 + $0xa0] sm:$0xff]
      %v598 = vld [vmem:[#allocation2 + $0xa8] sm:$0xff]
      %v599 = vld [vmem:[#allocation2 + $0xb0] sm:$0xff]
      %v600 = vld [vmem:[#allocation2 + $0xb8] sm:$0xff]
      %v601 = vld [vmem:[#allocation2 + $0xc0] sm:$0xff]
      %v602 = vld [vmem:[#allocation2 + $0xc8] sm:$0xff]
      %v603 = vld [vmem:[#allocation2 + $0xd0] sm:$0xff]
      %v604 = vld [vmem:[#allocation2 + $0xd8] sm:$0xff]
      %v605 = vld [vmem:[#allocation2 + $0xe0] sm:$0xff]
      %v606 = vld [vmem:[#allocation2 + $0xe8] sm:$0xff]
      %v607 = vld [vmem:[#allocation2 + $0xf0] sm:$0xff]
      %v608 = vld [vmem:[#allocation2 + $0xf8] sm:$0xff]
      %v609 = vsub.f32 %v577, %v545
      %v610 = vsub.f32 %v578, %v546
      %v611 = vsub.f32 %v579, %v547
      %v612 = vsub.f32 %v580, %v548
      %v613 = vsub.f32 %v581, %v549
      %v614 = vsub.f32 %v582, %v550
      %v615 = vsub.f32 %v583, %v551
      %v616 = vsub.f32 %v584, %v552
      %v617 = vsub.f32 %v585, %v553
      %v618 = vsub.f32 %v586, %v554
      %v619 = vsub.f32 %v587, %v555
      %v620 = vsub.f32 %v588, %v556
      %v621 = vsub.f32 %v589, %v557
      %v622 = vsub.f32 %v590, %v558
      %v623 = vsub.f32 %v591, %v559
      %v624 = vsub.f32 %v592, %v560
      %v625 = vsub.f32 %v593, %v561
      %v626 = vsub.f32 %v594, %v562
      %v627 = vsub.f32 %v595, %v563
      %v628 = vsub.f32 %v596, %v564
      %v629 = vsub.f32 %v597, %v565
      %v630 = vsub.f32 %v598, %v566
      %v631 = vsub.f32 %v599, %v567
      %v632 = vsub.f32 %v600, %v568
      %v633 = vsub.f32 %v601, %v569
      %v634 = vsub.f32 %v602, %v570
      %v635 = vsub.f32 %v603, %v571
      %v636 = vsub.f32 %v604, %v572
      %v637 = vsub.f32 %v605, %v573
      %v638 = vsub.f32 %v606, %v574
      %v639 = vsub.f32 %v607, %v575
      %v640 = vsub.f32 %v608, %v576
      %v641 = vmax.f32 %v609, 0.0
      %v642 = vmax.f32 %v610, 0.0
      %v643 = vmax.f32 %v611, 0.0
      %v644 = vmax.f32 %v612, 0.0
      %v645 = vmax.f32 %v613, 0.0
      %v646 = vmax.f32 %v614, 0.0
      %v647 = vmax.f32 %v615, 0.0
      %v648 = vmax.f32 %v616, 0.0
      %v649 = vmax.f32 %v617, 0.0
      %v650 = vmax.f32 %v618, 0.0
      %v651 = vmax.f32 %v619, 0.0
      %v652 = vmax.f32 %v620, 0.0
      %v653 = vmax.f32 %v621, 0.0
      %v654 = vmax.f32 %v622, 0.0
      %v655 = vmax.f32 %v623, 0.0
      %v656 = vmax.f32 %v624, 0.0
      %v657 = vmax.f32 %v625, 0.0
      %v658 = vmax.f32 %v626, 0.0
      %v659 = vmax.f32 %v627, 0.0
      %v660 = vmax.f32 %v628, 0.0
      %v661 = vmax.f32 %v629, 0.0
      %v662 = vmax.f32 %v630, 0.0
      %v663 = vmax.f32 %v631, 0.0
      %v664 = vmax.f32 %v632, 0.0
      %v665 = vmax.f32 %v633, 0.0
      %v666 = vmax.f32 %v634, 0.0
      %v667 = vmax.f32 %v635, 0.0
      %v668 = vmax.f32 %v636, 0.0
      %v669 = vmax.f32 %v637, 0.0
      %v670 = vmax.f32 %v638, 0.0
      %v671 = vmax.f32 %v639, 0.0
      %v672 = vmax.f32 %v640, 0.0
      %673 = vst [vmem:[#allocation8] sm:$0xff] %v641
      %674 = vst [vmem:[#allocation8 + $0x8] sm:$0xff] %v642
      %675 = vst [vmem:[#allocation8 + $0x10] sm:$0xff] %v643
      %676 = vst [vmem:[#allocation8 + $0x18] sm:$0xff] %v644
      %677 = vst [vmem:[#allocation8 + $0x20] sm:$0xff] %v645
      %678 = vst [vmem:[#allocation8 + $0x28] sm:$0xff] %v646
      %679 = vst [vmem:[#allocation8 + $0x30] sm:$0xff] %v647
      %680 = vst [vmem:[#allocation8 + $0x38] sm:$0xff] %v648
      %681 = vst [vmem:[#allocation8 + $0x40] sm:$0xff] %v649
      %682 = vst [vmem:[#allocation8 + $0x48] sm:$0xff] %v650
      %683 = vst [vmem:[#allocation8 + $0x50] sm:$0xff] %v651
      %684 = vst [vmem:[#allocation8 + $0x58] sm:$0xff] %v652
      %685 = vst [vmem:[#allocation8 + $0x60] sm:$0xff] %v653
      %686 = vst [vmem:[#allocation8 + $0x68] sm:$0xff] %v654
      %687 = vst [vmem:[#allocation8 + $0x70] sm:$0xff] %v655
      %688 = vst [vmem:[#allocation8 + $0x78] sm:$0xff] %v656
      %689 = vst [vmem:[#allocation8 + $0x80] sm:$0xff] %v657
      %690 = vst [vmem:[#allocation8 + $0x88] sm:$0xff] %v658
      %691 = vst [vmem:[#allocation8 + $0x90] sm:$0xff] %v659
      %692 = vst [vmem:[#allocation8 + $0x98] sm:$0xff] %v660
      %693 = vst [vmem:[#allocation8 + $0xa0] sm:$0xff] %v661
      %694 = vst [vmem:[#allocation8 + $0xa8] sm:$0xff] %v662
      %695 = vst [vmem:[#allocation8 + $0xb0] sm:$0xff] %v663
      %696 = vst [vmem:[#allocation8 + $0xb8] sm:$0xff] %v664
      %697 = vst [vmem:[#allocation8 + $0xc0] sm:$0xff] %v665
      %698 = vst [vmem:[#allocation8 + $0xc8] sm:$0xff] %v666
      %699 = vst [vmem:[#allocation8 + $0xd0] sm:$0xff] %v667
      %700 = vst [vmem:[#allocation8 + $0xd8] sm:$0xff] %v668
      %701 = vst [vmem:[#allocation8 + $0xe0] sm:$0xff] %v669
      %702 = vst [vmem:[#allocation8 + $0xe8] sm:$0xff] %v670
      %703 = vst [vmem:[#allocation8 + $0xf0] sm:$0xff] %v671
      %704 = vst [vmem:[#allocation8 + $0xf8] sm:$0xff] %v672
    $region25: #{tpu_custom_call.1} parent=1 // pred_fallthru
      _
    // Predicated region
    $region26: #{tpu_custom_call.1} parent=1 // pred_check
      _
    $region27: #{tpu_custom_call.1} parent=1 // pred_check_branch
      %706 = sbr.rel (0) target = $region29
    $region28: #{tpu_custom_call.1} parent=1 // pred_region
      %s708 = ssub.s32 4096, 4096
      %709 = vsyncadd [#allocation5], %s708
      %s710 = sshll.u32 [#allocation8], 4
      %s711 = int_to_ptr.vmem [resolvable:$true] %s710
      %716 = dma.vmem_to_hbm [thread:$0]  %s711, 4096, %s2, [#allocation5], 256, 256, 16
    $region29: #{tpu_custom_call.1} parent=1 // pred_fallthru
      _
    // Predicated region
    $region30: #{tpu_custom_call.1} parent=1 // pred_check
      _
    $region31: #{tpu_custom_call.1} parent=1 // pred_check_branch
      %718 = sbr.rel (0) target = $region33
    $region32: #{tpu_custom_call.1} parent=1 // pred_region
      %719 = dma.done [#allocation5], 4096
    $region33: #{tpu_custom_call.1} parent=1 // pred_fallthru
      _
    %720 = vsyncpa [#allocation4], 1
    %721 = vsyncpa [#allocation7], 1
    %722 = vsyncpa [#allocation5], 1

</llo_original>
